<compile_context>
chip_gen: v5e
topology: v5e:2x2
jax: 0.10.0
libtpu: 0.0.40
codegen_flags: <defaults>
</compile_context>

<pallas_src>
import math

import jax
import jax.numpy as jnp
from jax.experimental import pallas as pl
from jax.experimental.pallas import tpu as pltpu

LANE = 128


def _round_up(x, m):
    return ((x + m - 1) // m) * m


def _make_conv_tap_kernel(K, dilation, tl):
    def kernel(x_ref, xh_ref, w_ref, b_ref, o_ref):
        # x_ref:  (1, C_in, tl)        main length tile of the left-padded input
        # xh_ref: (1, C_in, HALO_BLK)  right halo = first columns of the next tile
        # w_ref:  (K, C_out, C_in)     tap-major weights (VMEM-resident)
        # b_ref:  (C_out, 1)           bias (VMEM-resident)
        # o_ref:  (1, C_out, tl)
        xw = jnp.concatenate([x_ref[0], xh_ref[0]], axis=-1)  # (C_in, tl + HALO_BLK)
        acc = None
        for k in range(K):                                    # K is a small static constant
            s = k * dilation
            xs = xw[:, s:s + tl]                              # shifted tap window (C_in, tl)
            y = jnp.dot(w_ref[k], xs, preferred_element_type=jnp.float32)
            acc = y if acc is None else acc + y
        o_ref[0] = (acc + b_ref[...]).astype(o_ref.dtype)

    return kernel


def custom_conv1d(x, weight, bias, padding, dilation, *, max_tile=8192):
    """Matches F.conv1d(F.pad(x, (padding, 0)), weight, bias, dilation=dilation)."""
    N, C_in, L = x.shape
    C_out, C_in_w, K = weight.shape
    assert C_in == C_in_w
    halo = dilation * (K - 1)
    L_out = L + padding - halo
    assert L_out > 0
    assert max_tile >= LANE

    # Halo block width: one lane-aligned chunk that covers the dilated receptive-field tail.
    HALO_BLK = max(LANE, _round_up(halo, LANE))

    # Length tile: multiple of HALO_BLK (hence of 128), as large as allowed.
    tl = min(_round_up(max_tile, HALO_BLK), _round_up(L_out, HALO_BLK))
    # Keep >= 2 grid steps when possible so the v7x megacore can split the work across TCs.
    if N * pl.cdiv(L_out, tl) < 2 and tl > HALO_BLK:
        tl = max(HALO_BLK, _round_up(pl.cdiv(L_out, 2), HALO_BLK))
    assert tl % HALO_BLK == 0
    h_per_tl = tl // HALO_BLK
    n_tl = pl.cdiv(L_out, tl)
    L_out_pad = n_tl * tl

    # Left 'causal' pad + right zero pad so every (tl + HALO_BLK) window stays in bounds.
    # (The right pad only feeds outputs beyond L_out, which Pallas masks on store.)
    # TODO(synk): the left pad could be handled in-kernel (pl.when on the first tile) to
    # avoid this one extra copy of x; kept as jnp.pad since x is the smaller HBM stream.
    xp_len = L_out_pad + HALO_BLK
    xp = jnp.pad(x, ((0, 0), (0, 0), (padding, xp_len - (L + padding))))

    wk = jnp.transpose(weight, (2, 0, 1))  # (K, C_out, C_in), tap-major
    b2 = bias.reshape(C_out, 1)

    # Explicit VMEM budget: double-buffered x/halo/out tiles + resident weights + headroom.
    itemsize = jnp.dtype(x.dtype).itemsize
    bytes_per_step = itemsize * (
        2 * C_in * (tl + HALO_BLK) + 2 * C_out * tl + K * C_out * C_in + C_out
    )
    vmem_limit = int(min(48 << 20, 4 * bytes_per_step + (16 << 20)))

    kernel = _make_conv_tap_kernel(K, dilation, tl)

    out = pl.pallas_call(
        kernel,
        out_shape=jax.ShapeDtypeStruct((N, C_out, L_out), x.dtype),
        grid_spec=pltpu.PrefetchScalarGridSpec(
            num_scalar_prefetch=0,
            grid=(N, n_tl),
            in_specs=[
                # main length tile
                pl.BlockSpec((1, C_in, tl), lambda n, j: (n, 0, j)),
                # right halo: start of the next tile, read from the same padded array
                pl.BlockSpec((1, C_in, HALO_BLK),
                             lambda n, j: (n, 0, (j + 1) * h_per_tl)),
                # weights / bias: constant index maps -> VMEM-resident across the grid
                pl.BlockSpec((K, C_out, C_in), lambda n, j: (0, 0, 0)),
                pl.BlockSpec((C_out, 1), lambda n, j: (0, 0)),
            ],
            out_specs=pl.BlockSpec((1, C_out, tl), lambda n, j: (n, 0, j)),
        ),
        compiler_params=pltpu.CompilerParams(
            dimension_semantics=("parallel", "parallel"),
            vmem_limit_bytes=vmem_limit,
        ),
    )(xp, xp, wk, b2)

    return out


def _reference_conv1d(x, weight, bias, padding, dilation):
    # Pure-JAX reference (XLA conv) for a correctness check.
    out = jax.lax.conv_general_dilated(
        x,
        weight,
        window_strides=(1,),
        padding=[(padding, 0)],
        rhs_dilation=(dilation,),
        dimension_numbers=("NCH", "OIH", "NCH"),
    )
    return out + bias[None, :, None]


if __name__ == "__main__":
    # Module hyperparameters (small, wavenet-style causal conv)
    in_channels = 4
    out_channels = 8
    kernel_size = 3
    dilation = 2
    padding = dilation * (kernel_size - 1)  # causal left padding -> L_out == L

    key = jax.random.PRNGKey(0)
    kx, kw, kb, kx2 = jax.random.split(key, 4)

    # Deterministic parameter init matching the PyTorch module's __init__:
    # uniform(-k, k) with k = sqrt(1 / (in_channels * kernel_size))
    k_bound = math.sqrt(1.0 / (in_channels * kernel_size))
    weight = jax.random.uniform(
        kw, (out_channels, in_channels, kernel_size),
        minval=-k_bound, maxval=k_bound, dtype=jnp.float32)
    bias = jax.random.uniform(
        kb, (out_channels,), minval=-k_bound, maxval=k_bound, dtype=jnp.float32)

    # Case 1: the small shape implied by the module (single length tile, ragged output block).
    batch, length = 2, 16
    x = jax.random.normal(kx, (batch, in_channels, length), dtype=jnp.float32)
    out = jax.block_until_ready(custom_conv1d(x, weight, bias, padding, dilation))
    ref = jax.block_until_ready(_reference_conv1d(x, weight, bias, padding, dilation))
    assert out.shape == ref.shape, (out.shape, ref.shape)
    assert jnp.allclose(out, ref, atol=1e-5, rtol=1e-5), float(jnp.max(jnp.abs(out - ref)))

    # Case 2: exercise the multi-tile path + halo crossing + masked ragged last block.
    length2 = 300
    x2 = jax.random.normal(kx2, (batch, in_channels, length2), dtype=jnp.float32)
    out2 = jax.block_until_ready(
        custom_conv1d(x2, weight, bias, padding, dilation, max_tile=128))
    ref2 = jax.block_until_ready(_reference_conv1d(x2, weight, bias, padding, dilation))
    assert out2.shape == ref2.shape, (out2.shape, ref2.shape)
    assert jnp.allclose(out2, ref2, atol=1e-5, rtol=1e-5), float(jnp.max(jnp.abs(out2 - ref2)))

    print("KERNEL_OK")
</pallas_src>

<mosaic_0001>
module attributes {stable_mosaic.version = 11 : i64} {
  func.func @kernel(%arg0: i32, %arg1: i32, %arg2: memref<1x4x128xf32, #tpu.memory_space<vmem>>, %arg3: memref<1x4x128xf32, #tpu.memory_space<vmem>>, %arg4: memref<3x8x4xf32, #tpu.memory_space<vmem>>, %arg5: memref<8x1xf32, #tpu.memory_space<vmem>>, %arg6: memref<1x8x128xf32, #tpu.memory_space<vmem>>) attributes {dimension_semantics = [#tpu.dimension_semantics<parallel>, #tpu.dimension_semantics<parallel>], iteration_bounds = array<i64: 2, 1>, scalar_prefetch = 0 : i64, scratch_operands = 0 : i64, tpu.core_type = #tpu.core_type<tc>, window_params = [{transform_indices = @transform_0, window_bounds = array<i64: 1, 4, 128>}, {transform_indices = @transform_1, window_bounds = array<i64: 1, 4, 128>}, {pipeline_mode = #tpu.pipeline_mode<synchronous>, transform_indices = @transform_2, window_bounds = array<i64: 3, 8, 4>}, {pipeline_mode = #tpu.pipeline_mode<synchronous>, transform_indices = @transform_3, window_bounds = array<i64: 8, 1>}, {transform_indices = @transform_4, window_bounds = array<i64: 1, 8, 128>}]} {
    %c0 = arith.constant 0 : index
    %c0_0 = arith.constant 0 : index
    %c0_1 = arith.constant 0 : index
    %0 = vector.load %arg2[%c0, %c0_0, %c0_1] : memref<1x4x128xf32, #tpu.memory_space<vmem>>, vector<1x4x128xf32>
    %1 = vector.shape_cast %0 : vector<1x4x128xf32> to vector<4x128xf32>
    %c0_2 = arith.constant 0 : index
    %c0_3 = arith.constant 0 : index
    %c0_4 = arith.constant 0 : index
    %2 = vector.load %arg3[%c0_2, %c0_3, %c0_4] : memref<1x4x128xf32, #tpu.memory_space<vmem>>, vector<1x4x128xf32>
    %3 = vector.shape_cast %2 : vector<1x4x128xf32> to vector<4x128xf32>
    %4 = tpu.concatenate %1, %3 in 1 : vector<4x128xf32>, vector<4x128xf32> -> vector<4x256xf32>
    %5 = vector.extract_strided_slice %4 {offsets = [0, 0], sizes = [4, 128], strides = [1, 1]} : vector<4x256xf32> to vector<4x128xf32>
    %c0_5 = arith.constant 0 : index
    %c0_6 = arith.constant 0 : index
    %c0_7 = arith.constant 0 : index
    %6 = vector.load %arg4[%c0_5, %c0_6, %c0_7] : memref<3x8x4xf32, #tpu.memory_space<vmem>>, vector<1x8x4xf32>
    %7 = vector.shape_cast %6 : vector<1x8x4xf32> to vector<8x4xf32>
    %cst = arith.constant dense<0.000000e+00> : vector<8x128xf32>
    %8 = tpu.matmul %7, %5, %cst {dimension_numbers = #tpu.dot_dimension_numbers<[1], [0], [0], [1], [0, 0, 1, 1], [], []>} : vector<8x4xf32>, vector<4x128xf32>, vector<8x128xf32> -> vector<8x128xf32>
    %9 = vector.extract_strided_slice %4 {offsets = [0, 2], sizes = [4, 128], strides = [1, 1]} : vector<4x256xf32> to vector<4x128xf32>
    %c1 = arith.constant 1 : index
    %c0_8 = arith.constant 0 : index
    %c0_9 = arith.constant 0 : index
    %10 = vector.load %arg4[%c1, %c0_8, %c0_9] : memref<3x8x4xf32, #tpu.memory_space<vmem>>, vector<1x8x4xf32>
    %11 = vector.shape_cast %10 : vector<1x8x4xf32> to vector<8x4xf32>
    %cst_10 = arith.constant dense<0.000000e+00> : vector<8x128xf32>
    %12 = tpu.matmul %11, %9, %cst_10 {dimension_numbers = #tpu.dot_dimension_numbers<[1], [0], [0], [1], [0, 0, 1, 1], [], []>} : vector<8x4xf32>, vector<4x128xf32>, vector<8x128xf32> -> vector<8x128xf32>
    %13 = arith.addf %8, %12 : vector<8x128xf32>
    %14 = vector.extract_strided_slice %4 {offsets = [0, 4], sizes = [4, 128], strides = [1, 1]} : vector<4x256xf32> to vector<4x128xf32>
    %c2 = arith.constant 2 : index
    %c0_11 = arith.constant 0 : index
    %c0_12 = arith.constant 0 : index
    %15 = vector.load %arg4[%c2, %c0_11, %c0_12] : memref<3x8x4xf32, #tpu.memory_space<vmem>>, vector<1x8x4xf32>
    %16 = vector.shape_cast %15 : vector<1x8x4xf32> to vector<8x4xf32>
    %cst_13 = arith.constant dense<0.000000e+00> : vector<8x128xf32>
    %17 = tpu.matmul %16, %14, %cst_13 {dimension_numbers = #tpu.dot_dimension_numbers<[1], [0], [0], [1], [0, 0, 1, 1], [], []>} : vector<8x4xf32>, vector<4x128xf32>, vector<8x128xf32> -> vector<8x128xf32>
    %18 = arith.addf %13, %17 : vector<8x128xf32>
    %c0_14 = arith.constant 0 : index
    %c0_15 = arith.constant 0 : index
    %19 = vector.load %arg5[%c0_14, %c0_15] : memref<8x1xf32, #tpu.memory_space<vmem>>, vector<8x1xf32>
    %20 = vector.broadcast %19 : vector<8x1xf32> to vector<8x128xf32>
    %21 = arith.addf %18, %20 : vector<8x128xf32>
    %c0_16 = arith.constant 0 : index
    %c0_17 = arith.constant 0 : index
    %c0_18 = arith.constant 0 : index
    %22 = vector.load %arg6[%c0_16, %c0_17, %c0_18] : memref<1x8x128xf32, #tpu.memory_space<vmem>>, vector<1x8x128xf32>
    %23 = vector.shape_cast %22 : vector<1x8x128xf32> to vector<8x128xf32>
    %24 = vector.shape_cast %21 : vector<8x128xf32> to vector<1x8x128xf32>
    tpu.vector_store %arg6[%c0_16, %c0_17, %c0_18], %24 {strides = array<i32>} : memref<1x8x128xf32, #tpu.memory_space<vmem>>, vector<1x8x128xf32>,
    return
  }
  func.func @transform_0(%arg0: i32, %arg1: i32) -> (i32, i32, i32) {
    %c0_i32 = arith.constant 0 : i32
    %c0_i32_0 = arith.constant 0 : i32
    return %arg0, %c0_i32, %arg1 : i32, i32, i32
  }
  func.func @transform_1(%arg0: i32, %arg1: i32) -> (i32, i32, i32) {
    %c1_i32 = arith.constant 1 : i32
    %0 = arith.addi %arg1, %c1_i32 : i32
    %c1_i32_0 = arith.constant 1 : i32
    %1 = arith.muli %0, %c1_i32_0 : i32
    %c0_i32 = arith.constant 0 : i32
    %c0_i32_1 = arith.constant 0 : i32
    return %arg0, %c0_i32, %1 : i32, i32, i32
  }
  func.func @transform_2(%arg0: i32, %arg1: i32) -> (i32, i32, i32) {
    %c0_i32 = arith.constant 0 : i32
    %c0_i32_0 = arith.constant 0 : i32
    %c0_i32_1 = arith.constant 0 : i32
    %c0_i32_2 = arith.constant 0 : i32
    return %c0_i32, %c0_i32_0, %c0_i32_1 : i32, i32, i32
  }
  func.func @transform_3(%arg0: i32, %arg1: i32) -> (i32, i32) {
    %c0_i32 = arith.constant 0 : i32
    %c0_i32_0 = arith.constant 0 : i32
    %c0_i32_1 = arith.constant 0 : i32
    return %c0_i32, %c0_i32_0 : i32, i32
  }
  func.func @transform_4(%arg0: i32, %arg1: i32) -> (i32, i32, i32) {
    %c0_i32 = arith.constant 0 : i32
    %c0_i32_0 = arith.constant 0 : i32
    return %arg0, %c0_i32, %arg1 : i32, i32, i32
  }
}

</mosaic_0001>

<llo_original>
// kernel: tpu_custom_call.1
$region0: #{tpu_custom_call.1}
  #allocation0 [shape = 'u32[]', space=smem, size = 0x4, offset = 0x4, fixed_abs, tag = 'smem constant byte address 0x4 - core index']
  #allocation1 [shape = 'u32[72,128]{1,0:T(1,128)}', space=vmem, size = 0x9000, scoped, tag = 'internal scratch']
  %s0 = inlined_call_operand.vmem [shape: f32[2,4,256], index: 0, kind: input, shape index: {}]
  %s1 = inlined_call_operand.vmem [shape: f32[2,4,256], index: 1, kind: input, shape index: {}]
  %s2 = inlined_call_operand.vmem [shape: f32[3,8,4], index: 2, kind: input, shape index: {}]
  %s3 = inlined_call_operand.vmem [shape: f32[8,1], index: 3, kind: input, shape index: {}]
  %s4 = inlined_call_operand.hbm [shape: f32[2,8,16], index: 4, kind: output, shape index: {}]
  %s5 = sld [smem:[#allocation0]]
  $region49: #{tpu_custom_call.1} parent=0
    _
  %s7 = ssub.s32 1, %s5
  %s8 = scalar_select 0, %s7, %s5
  $region1: #{tpu_custom_call.1} parent=0
    #allocation2 [shape = 'u8[8192]{0}', space=vmem, size = 0x2000, scoped, tag = 'output window, operand 0']
    #allocation3 [shape = 's32[2]{0}', space=sflag, size = 0x8, scoped, tag = 'scoped memory for tpu_custom_call.1']
    %9 = vsyncpa [#allocation3], 0
    %s10 = scalar_lea.sflag [#allocation3], 1
    %11 = vsyncpa %s10, 0
    loop: start=0, step=1, limit=4
    $region2: #{tpu_custom_call.1} parent=1 // loop_pre_header
      _
    $region3: #{tpu_custom_call.1} parent=1 // loop_header
      %s13 = sphi 0, %s17
      %p14 = scmp.ge.s32.totalorder %s13, 4
      %s20 = sphi 0, %s32
      %s21 = sphi 0, %s28
      %s22 = sphi 0, %s20
      %s23 = sphi 0, %s21
      %s24 = sphi 0, %s22
      %s25 = sphi 0, %s23
      %s37 = sphi 0, %s39
      %s40 = sphi 0, %s37
      %s41 = sphi 0, %s40
      %s57 = sphi 0, %s41
      %s67 = sphi 0, %s69
      %s70 = sphi 0, %s67
      %s71 = sphi 0, %s70
      %s87 = sphi 0, %s71
      %s91 = sphi 0, %s91
      %s93 = sphi 0, %s91
      %s94 = sphi 0, %s93
      %s108 = sphi 0, %s94
      %s112 = sphi 0, %s112
      %s114 = sphi 0, %s112
      %s115 = sphi 0, %s114
      %s129 = sphi 0, %s115
      %s137 = sphi 0, %s139
      %s140 = sphi 0, %s137
      %s141 = sphi 0, %s140
      %s157 = sphi 0, %s141
    $region4: #{tpu_custom_call.1} parent=1 // loop_header_branch
      %16 = sbr.rel (%p14) target = $region8
    $region5: #{tpu_custom_call.1} parent=1 // loop_body
      %s18 = ssub.s32 %s13, 1
      %s19 = ssub.s32 %s13, 2
      %s26 = sadd.s32 1, %s21
      %p27 = scmp.ge.s32.totalorder %s26, 1
      %s28 = scalar_select %p27, 0, %s26
      %s29 = sadd.s32 1, %s20
      %s30 = scalar_select %p27, %s29, %s20
      %p31 = scmp.ge.s32.totalorder %s30, 2
      %s32 = scalar_select %p31, 0, %s30
      %s33 = ssub.s32 %s20, %s32
      %s34 = ssub.s32 %s21, %s28
      %s35 = sor.u32 %s33, %s34
      %p36 = scmp.eq.s32.totalorder %s35, 0
      %s38 = sadd.s32 %s37, 1
      %s39 = scalar_select %p36, %s37, %s38
      %p42 = pneg %p36
      %p43 = scmp.eq.s32.totalorder %s13, 1
      %p44 = por %p42, %p43
      %p45 = scmp.ne.s32.totalorder %s37, %s40
      %p46 = scmp.eq.s32.totalorder %s13, 0
      %p47 = por %p45, %p46
      %p48 = scmp.ne.s32.totalorder %s37, %s40
      %p49 = scmp.eq.s32.totalorder %s18, 1
      %p50 = por %p48, %p49
      %p51 = scmp.ne.s32.totalorder %s40, %s41
      %p52 = scmp.eq.s32.totalorder %s18, 0
      %p53 = por %p51, %p52
      %p54 = scmp.ne.s32.totalorder %s40, %s41
      %p55 = scmp.eq.s32.totalorder %s19, 1
      %p56 = por %p54, %p55
      %p58 = scmp.ne.s32.totalorder %s41, %s57
      %p59 = scmp.eq.s32.totalorder %s19, 0
      %p60 = por %p58, %p59
      %s61 = sadd.s32 %s21, 1
      %s62 = sadd.s32 %s28, 1
      %s63 = ssub.s32 %s20, %s32
      %s64 = ssub.s32 %s61, %s62
      %s65 = sor.u32 %s63, %s64
      %p66 = scmp.eq.s32.totalorder %s65, 0
      %s68 = sadd.s32 %s67, 1
      %s69 = scalar_select %p66, %s67, %s68
      %p72 = pneg %p66
      %p73 = scmp.eq.s32.totalorder %s13, 1
      %p74 = por %p72, %p73
      %p75 = scmp.ne.s32.totalorder %s67, %s70
      %p76 = scmp.eq.s32.totalorder %s13, 0
      %p77 = por %p75, %p76
      %p78 = scmp.ne.s32.totalorder %s67, %s70
      %p79 = scmp.eq.s32.totalorder %s18, 1
      %p80 = por %p78, %p79
      %p81 = scmp.ne.s32.totalorder %s70, %s71
      %p82 = scmp.eq.s32.totalorder %s18, 0
      %p83 = por %p81, %p82
      %p84 = scmp.ne.s32.totalorder %s70, %s71
      %p85 = scmp.eq.s32.totalorder %s19, 1
      %p86 = por %p84, %p85
      %p88 = scmp.ne.s32.totalorder %s71, %s87
      %p89 = scmp.eq.s32.totalorder %s19, 0
      %p90 = por %p88, %p89
      %s92 = sadd.s32 %s91, 1
      %p95 = scmp.eq.s32.totalorder %s13, 1
      %p96 = scmp.ne.s32.totalorder %s91, %s93
      %p97 = scmp.eq.s32.totalorder %s13, 0
      %p98 = por %p96, %p97
      %p99 = scmp.ne.s32.totalorder %s91, %s93
      %p100 = scmp.eq.s32.totalorder %s18, 1
      %p101 = por %p99, %p100
      %p102 = scmp.ne.s32.totalorder %s93, %s94
      %p103 = scmp.eq.s32.totalorder %s18, 0
      %p104 = por %p102, %p103
      %p105 = scmp.ne.s32.totalorder %s93, %s94
      %p106 = scmp.eq.s32.totalorder %s19, 1
      %p107 = por %p105, %p106
      %p109 = scmp.ne.s32.totalorder %s94, %s108
      %p110 = scmp.eq.s32.totalorder %s19, 0
      %p111 = por %p109, %p110
      %s113 = sadd.s32 %s112, 1
      %p116 = scmp.eq.s32.totalorder %s13, 1
      %p117 = scmp.ne.s32.totalorder %s112, %s114
      %p118 = scmp.eq.s32.totalorder %s13, 0
      %p119 = por %p117, %p118
      %p120 = scmp.ne.s32.totalorder %s112, %s114
      %p121 = scmp.eq.s32.totalorder %s18, 1
      %p122 = por %p120, %p121
      %p123 = scmp.ne.s32.totalorder %s114, %s115
      %p124 = scmp.eq.s32.totalorder %s18, 0
      %p125 = por %p123, %p124
      %p126 = scmp.ne.s32.totalorder %s114, %s115
      %p127 = scmp.eq.s32.totalorder %s19, 1
      %p128 = por %p126, %p127
      %p130 = scmp.ne.s32.totalorder %s115, %s129
      %p131 = scmp.eq.s32.totalorder %s19, 0
      %p132 = por %p130, %p131
      %s133 = ssub.s32 %s20, %s32
      %s134 = ssub.s32 %s21, %s28
      %s135 = sor.u32 %s133, %s134
      %p136 = scmp.eq.s32.totalorder %s135, 0
      %s138 = sadd.s32 %s137, 1
      %s139 = scalar_select %p136, %s137, %s138
      %p142 = pneg %p136
      %p143 = scmp.eq.s32.totalorder %s13, 1
      %p144 = por %p142, %p143
      %p145 = scmp.ne.s32.totalorder %s137, %s140
      %p146 = scmp.eq.s32.totalorder %s13, 0
      %p147 = por %p145, %p146
      %p148 = scmp.ne.s32.totalorder %s137, %s140
      %p149 = scmp.eq.s32.totalorder %s18, 1
      %p150 = por %p148, %p149
      %p151 = scmp.ne.s32.totalorder %s140, %s141
      %p152 = scmp.eq.s32.totalorder %s18, 0
      %p153 = por %p151, %p152
      %p154 = scmp.ne.s32.totalorder %s140, %s141
      %p155 = scmp.eq.s32.totalorder %s19, 1
      %p156 = por %p154, %p155
      %p158 = scmp.ne.s32.totalorder %s141, %s157
      %p159 = scmp.eq.s32.totalorder %s19, 0
      %p160 = por %p158, %p159
      %p161 = scmp.le.s32.totalorder 1, %s13
      %p162 = scmp.lt.s32.totalorder %s13, 3
      %p163 = pnand %p161, %p162
      %p164 = pneg %p163
      // Predicated region
      $region9: #{tpu_custom_call.1} parent=5 // pred_check
        _
      $region10: #{tpu_custom_call.1} parent=5 // pred_check_branch
        %166 = sbr.rel (%p163) target = $region12
      $region11: #{tpu_custom_call.1} parent=5 // pred_region
        %s167 = ssub.s32 %s13, 1
        // Predicated region
        $region13: #{tpu_custom_call.1} parent=11 // pred_check
          %p168 = pneg %p104
        $region14: #{tpu_custom_call.1} parent=11 // pred_check_branch
          %170 = sbr.rel (%p168) target = $region16
        $region15: #{tpu_custom_call.1} parent=11 // pred_region
          _
        $region16: #{tpu_custom_call.1} parent=11 // pred_fallthru
          _
        // Predicated region
        $region17: #{tpu_custom_call.1} parent=11 // pred_check
          %p171 = pneg %p125
        $region18: #{tpu_custom_call.1} parent=11 // pred_check_branch
          %173 = sbr.rel (%p171) target = $region20
        $region19: #{tpu_custom_call.1} parent=11 // pred_region
          _
        $region20: #{tpu_custom_call.1} parent=11 // pred_fallthru
          _
      $region12: #{tpu_custom_call.1} parent=5 // pred_fallthru
        _
      %p174 = scmp.lt.s32.totalorder %s13, 2
      // Predicated region
      $region21: #{tpu_custom_call.1} parent=5 // pred_check
        %p175 = pneg %p174
      $region22: #{tpu_custom_call.1} parent=5 // pred_check_branch
        %177 = sbr.rel (%p175) target = $region24
      $region23: #{tpu_custom_call.1} parent=5 // pred_region
        // Predicated region
        $region25: #{tpu_custom_call.1} parent=23 // pred_check
          %p178 = pneg %p47
        $region26: #{tpu_custom_call.1} parent=23 // pred_check_branch
          %180 = sbr.rel (%p178) target = $region28
        $region27: #{tpu_custom_call.1} parent=23 // pred_region
          %p181 = scmp.lt.s32.totalorder %s20, 1
          %s182 = scalar_select %p181, %s20, 1
          %p183 = scmp.lt.s32.totalorder %s21, 1
          %s184 = scalar_select %p183, %s21, 1
          %s185 = smul.addr %s182, 2
          %s186 = sadd.s32 %s184, %s185
          %s187 = smul.addr %s186, 4
          %s188 = scalar_lea.vmem %s0, %s187
        $region28: #{tpu_custom_call.1} parent=23 // pred_fallthru
          _
        // Predicated region
        $region29: #{tpu_custom_call.1} parent=23 // pred_check
          %p189 = pneg %p77
        $region30: #{tpu_custom_call.1} parent=23 // pred_check_branch
          %191 = sbr.rel (%p189) target = $region32
        $region31: #{tpu_custom_call.1} parent=23 // pred_region
          %s192 = sadd.s32 %s21, 1
          %p193 = scmp.lt.s32.totalorder %s20, 1
          %s194 = scalar_select %p193, %s20, 1
          %p195 = scmp.lt.s32.totalorder %s192, 1
          %s196 = scalar_select %p195, %s192, 1
          %s197 = smul.addr %s194, 2
          %s198 = sadd.s32 %s196, %s197
          %s199 = smul.addr %s198, 4
          %s200 = scalar_lea.vmem %s1, %s199
          %s201 = sadd.s32 %s21, 1
        $region32: #{tpu_custom_call.1} parent=23 // pred_fallthru
          _
      $region24: #{tpu_custom_call.1} parent=5 // pred_fallthru
        _
      %p202 = scmp.le.s32.totalorder 1, %s13
      %p203 = scmp.lt.s32.totalorder %s13, 3
      %p204 = pnand %p202, %p203
      %p205 = pneg %p204
      // Predicated region
      $region33: #{tpu_custom_call.1} parent=5 // pred_check
        _
      $region34: #{tpu_custom_call.1} parent=5 // pred_check_branch
        %207 = sbr.rel (%p204) target = $region36
      $region35: #{tpu_custom_call.1} parent=5 // pred_region
        %s208 = ssub.s32 %s13, 1
        %p209 = scmp.lt.s32.totalorder %s22, 1
        %s210 = scalar_select %p209, %s22, 1
        %p211 = scmp.lt.s32.totalorder %s23, 1
        %s212 = scalar_select %p211, %s23, 1
        %s213 = smul.addr %s210, 2
        %s214 = sadd.s32 %s212, %s213
        %s215 = smul.addr %s214, 4
        %s216 = scalar_lea.vmem %s0, %s215
        %p217 = pneg %p53
        %p218 = pneg %p50
        %s219 = sadd.s32 %s23, 1
        %p220 = scmp.lt.s32.totalorder %s22, 1
        %s221 = scalar_select %p220, %s22, 1
        %p222 = scmp.lt.s32.totalorder %s219, 1
        %s223 = scalar_select %p222, %s219, 1
        %s224 = smul.addr %s221, 2
        %s225 = sadd.s32 %s223, %s224
        %s226 = smul.addr %s225, 4
        %s227 = scalar_lea.vmem %s1, %s226
        %p228 = pneg %p83
        %p229 = pneg %p80
        %p230 = pneg %p104
        %p231 = pneg %p101
        %p232 = pneg %p125
        %p233 = pneg %p122
        %p234 = pneg %p153
        %p235 = pneg %p150
        %s236 = sand.u32 %s140, 1
        %s237 = scalar_lea.sflag [#allocation3], %s236
        %s238 = sand.u32 %s140, 1
        %s239 = smul.addr %s238, 8
        %s240 = scalar_lea.vmem [#allocation2], %s239
        %p241 = scmp.lt.s32.totalorder %s22, 1
        %s242 = scalar_select %p241, %s22, 1
        %p243 = scmp.lt.s32.totalorder %s23, 1
        %s244 = scalar_select %p243, %s23, 1
        %s245 = smul.addr %s242, 2
        %s246 = sadd.s32 %s244, %s245
        %s247 = smul.addr %s246, 4
        %s248 = scalar_lea.vmem %s0, %s247
        %s249 = sadd.s32 %s23, 1
        %p250 = scmp.lt.s32.totalorder %s22, 1
        %s251 = scalar_select %p250, %s22, 1
        %p252 = scmp.lt.s32.totalorder %s249, 1
        %s253 = scalar_select %p252, %s249, 1
        %s254 = smul.addr %s251, 2
        %s255 = sadd.s32 %s253, %s254
        %s256 = smul.addr %s255, 4
        %s257 = scalar_lea.vmem %s1, %s256
        %s258 = sadd.s32 %s23, 1
        %v259 = vld [vmem:[%s248] sm:$0xf]
        %v260 = vld [vmem:[%s257] sm:$0xf]
        %v261 = vld [vmem:[%s2] sm:$0xff]
        %s262 = scalar_lea.vmem %s2, 8
        %v263 = vld [vmem:[%s262] sm:$0xff]
        %266 = vrot.lane.b32.xlu0 %v259, 126
        %v267 = vpop.permute.xlu0 %266
        %268 = vrot.lane.b32.xlu0 %v260, 126
        %v269 = vpop.permute.xlu0 %268
        %vm270 = vcmask 1031168
        %v271 = vsel %vm270, %v267, %v269
        %vm272 = vcmask 31744
        %v274 = vsel %vm272, %v263, 0
        %vm276 = vcmask 1043456
        %v277 = vsel %vm276, %v271, 0
        %279 = vmatpush.msra.mxu0 0.0
        %280 = vmatpush.msra.mxu0 0.0
        %281 = vmatpush.msra.mxu0 0.0
        %282 = vmatpush.msra.mxu0 0.0
        %283 = vmatpush.msra.mxu0 0.0
        %284 = vmatpush.msra.mxu0 0.0
        %285 = vmatpush.msra.mxu0 0.0
        %286 = vmatpush.msra.mxu0 0.0
        %287 = vmatpush.msra.mxu0 0.0
        %288 = vmatpush.msra.mxu0 0.0
        %289 = vmatpush.msra.mxu0 0.0
        %290 = vmatpush.msra.mxu0 0.0
        %291 = vmatpush.msra.mxu0 0.0
        %292 = vmatpush.msra.mxu0 0.0
        %293 = vmatpush.msra.mxu0 0.0
        %294 = vmatpush.msra.mxu0 %v277
        %295 = vmatmul.f32.gmra.mxu0 %v274
        %v296 = vpop.f32.mrf.mxu0
        %v297 = vadd.f32 0.0, %v296
        %298 = vdwg.mxu0
        %v300 = vsel %vm272, %v261, 0
        %v302 = vsel %vm276, %v259, 0
        %304 = vmatpush.msra.mxu0 0.0
        %305 = vmatpush.msra.mxu0 0.0
        %306 = vmatpush.msra.mxu0 0.0
        %307 = vmatpush.msra.mxu0 0.0
        %308 = vmatpush.msra.mxu0 0.0
        %309 = vmatpush.msra.mxu0 0.0
        %310 = vmatpush.msra.mxu0 0.0
        %311 = vmatpush.msra.mxu0 0.0
        %312 = vmatpush.msra.mxu0 0.0
        %313 = vmatpush.msra.mxu0 0.0
        %314 = vmatpush.msra.mxu0 0.0
        %315 = vmatpush.msra.mxu0 0.0
        %316 = vmatpush.msra.mxu0 0.0
        %317 = vmatpush.msra.mxu0 0.0
        %318 = vmatpush.msra.mxu0 0.0
        %319 = vmatpush.msra.mxu0 %v302
        %320 = vmatmul.f32.gmra.mxu0 %v300
        %v321 = vpop.f32.mrf.mxu0
        %v322 = vadd.f32 %v297, %v321
        %323 = vdwg.mxu0
        %s324 = scalar_lea.vmem %s2, 16
        %v325 = vld [vmem:[%s324] sm:$0xff]
        %326 = vrot.lane.b32.xlu0 %v259, 124
        %v327 = vpop.permute.xlu0 %326
        %328 = vrot.lane.b32.xlu0 %v260, 124
        %v329 = vpop.permute.xlu0 %328
        %vm330 = vcmask 1014784
        %v331 = vsel %vm330, %v327, %v329
        %v333 = vsel %vm272, %v325, 0
        %v335 = vsel %vm276, %v331, 0
        %337 = vmatpush.msra.mxu0 0.0
        %338 = vmatpush.msra.mxu0 0.0
        %339 = vmatpush.msra.mxu0 0.0
        %340 = vmatpush.msra.mxu0 0.0
        %341 = vmatpush.msra.mxu0 0.0
        %342 = vmatpush.msra.mxu0 0.0
        %343 = vmatpush.msra.mxu0 0.0
        %344 = vmatpush.msra.mxu0 0.0
        %345 = vmatpush.msra.mxu0 0.0
        %346 = vmatpush.msra.mxu0 0.0
        %347 = vmatpush.msra.mxu0 0.0
        %348 = vmatpush.msra.mxu0 0.0
        %349 = vmatpush.msra.mxu0 0.0
        %350 = vmatpush.msra.mxu0 0.0
        %351 = vmatpush.msra.mxu0 0.0
        %352 = vmatpush.msra.mxu0 %v335
        %353 = vmatmul.f32.gmra.mxu0 %v333
        %v354 = vpop.f32.mrf.mxu0
        %v355 = vadd.f32 0.0, %v354
        %356 = vdwg.mxu0
        %v357 = vadd.f32 %v322, %v355
        %v358 = vld [vmem:[%s3] sm:$0xff]
        %360 = vset.pattern.permute.xlu0 0
        %361 = vperm.xlu0 %360, %v358
        %v362 = vpop.permute.xlu0 %361
        %v364 = vadd.f32 %v357, %v362
        %365 = vst [vmem:[%s240] sm:$0xff] %v364
        %s366 = sand.u32 %s140, 1
        %s367 = scalar_lea.sflag [#allocation3], %s366
        %s368 = sand.u32 %s140, 1
        %s369 = smul.addr %s368, 8
        %s370 = scalar_lea.vmem [#allocation2], %s369
        // Predicated region
        $region37: #{tpu_custom_call.1} parent=35 // pred_check
          %p371 = pneg %p150
        $region38: #{tpu_custom_call.1} parent=35 // pred_check_branch
          %373 = sbr.rel (%p371) target = $region40
        $region39: #{tpu_custom_call.1} parent=35 // pred_region
          %375 = vsyncadd %s367, 0
          %s376 = sadd.s32 %s23, %s22
          %s377 = smul.addr %s376, 8
          %s378 = scalar_lea.hbm %s4, %s377
          %s380 = sshll.u32 %s370, 4
          %s381 = int_to_ptr.vmem [resolvable:$true] %s380
          %s382 = sshll.u32 %s378, 4
          %s383 = int_to_ptr.hbm [resolvable:$true] %s382
          %385 = dma.vmem_to_hbm [thread:$0]  %s381, 128, %s383, %s367
        $region40: #{tpu_custom_call.1} parent=35 // pred_fallthru
          _
      $region36: #{tpu_custom_call.1} parent=5 // pred_fallthru
        _
      %p386 = scmp.le.s32.totalorder 2, %s13
      // Predicated region
      $region41: #{tpu_custom_call.1} parent=5 // pred_check
        %p387 = pneg %p386
      $region42: #{tpu_custom_call.1} parent=5 // pred_check_branch
        %389 = sbr.rel (%p387) target = $region44
      $region43: #{tpu_custom_call.1} parent=5 // pred_region
        %s390 = ssub.s32 %s13, 2
        // Predicated region
        $region45: #{tpu_custom_call.1} parent=43 // pred_check
          %p391 = pneg %p156
        $region46: #{tpu_custom_call.1} parent=43 // pred_check_branch
          %393 = sbr.rel (%p391) target = $region48
        $region47: #{tpu_custom_call.1} parent=43 // pred_region
          %s394 = sand.u32 %s141, 1
          %s395 = scalar_lea.sflag [#allocation3], %s394
          %s396 = sand.u32 %s141, 1
          %s397 = smul.addr %s396, 8
          %s398 = scalar_lea.vmem [#allocation2], %s397
          %400 = dma.done %s395, 128
        $region48: #{tpu_custom_call.1} parent=43 // pred_fallthru
          _
      $region44: #{tpu_custom_call.1} parent=5 // pred_fallthru
        _
    $region6: #{tpu_custom_call.1} parent=1 // loop_footer
      %s17 = sadd.s32 1, %s13
    $region7: #{tpu_custom_call.1} parent=1 // loop_footer_branch
      %12 = sbr.rel target = $region3
    $region8: #{tpu_custom_call.1} parent=1 // loop_exit
      _
    %401 = vsyncpa [#allocation3], 1
    %s402 = scalar_lea.sflag [#allocation3], 1
    %403 = vsyncpa %s402, 1

</llo_original>
